<compile_context>
chip_gen: v7x
topology: tpu7x:2x2x1
jax: 0.10.0
libtpu: 0.0.40
codegen_flags: <defaults>
</compile_context>

<pallas_src>
import functools

import jax
import jax.numpy as jnp
from jax.experimental import pallas as pl
from jax.experimental.pallas import tpu as pltpu


def _round_up(x, m):
    return ((x + m - 1) // m) * m


def _kernel_project_after(adj_ref, hk_ref, hrow_ref, cm_ref, w_ref, bias_ref,
                          out_ref, acc_ref):
    """in_feats <= out_feats: aggregate first, project (@W) in the epilogue."""
    k = pl.program_id(1)

    @pl.when(k == 0)
    def _init():
        acc_ref[...] = jnp.zeros_like(acc_ref)

    # Hot loop: native bf16 x bf16 -> f32 MXU accumulate (adj entries exact in bf16).
    acc_ref[...] += jnp.dot(adj_ref[...], hk_ref[...],
                            preferred_element_type=jnp.float32)

    @pl.when(k == pl.num_programs(1) - 1)
    def _finalize():
        # cm = (1-lin)*mask*norm ; hrow already carries lin*mask*norm.
        # NOTE: applying the per-row mask*norm scaling BEFORE the projection is
        # algebraically identical to the reference order (diagonal row scaling
        # commutes with right-multiplication by W) -- do not "fix" this.
        mixed = cm_ref[...] * acc_ref[...] + hrow_ref[...]
        out_ref[...] = (jnp.dot(mixed, w_ref[...],
                                preferred_element_type=jnp.float32)
                        + bias_ref[...])


def _kernel_no_project(adj_ref, hk_ref, hrow_ref, cm_ref, bias_ref, out_ref):
    """in_feats > out_feats: h was projected in the prologue; accumulate into out."""
    k = pl.program_id(1)

    @pl.when(k == 0)
    def _init():
        out_ref[...] = jnp.zeros_like(out_ref)

    # out block index is constant over k -> VMEM-resident accumulator; no scratch.
    out_ref[...] += jnp.dot(adj_ref[...], hk_ref[...],
                            preferred_element_type=jnp.float32)

    @pl.when(k == pl.num_programs(1) - 1)
    def _finalize():
        out_ref[...] = cm_ref[...] * out_ref[...] + hrow_ref[...] + bias_ref[...]


@functools.partial(jax.jit, static_argnames=("tm", "tk"))
def our_layer_gcn(adj, feat, weight, linear_comb, bias, *, tm=None, tk=None):
    n, f_in = feat.shape
    f_out = weight.shape[1]
    project_after = f_in <= f_out
    f_mid = f_in if project_after else f_out
    f_mid_p = _round_up(f_mid, 128)
    f_out_p = _round_up(f_out, 128)

    # ---- generation-aware defaults -----------------------------------------
    try:
        vmem_cap = int(pltpu.get_tpu_info().vmem_capacity_bytes)
    except Exception:  # pragma: no cover - fall back to the smallest (v7x) budget
        vmem_cap = 64 << 20
    if tk is None:
        tk = 1024
    if tm is None:
        # 128-MiB-VMEM generations (v5e/v6e) with small feature dims: go bigger.
        tm = 2048 if (vmem_cap >= (96 << 20) and max(f_mid_p, f_out_p) <= 256) else 1024

    # ---- prologue (plain JAX, O(N*F)): norm, h, per-row mix coefficients ----
    # Single widening reduction over the original adj -- no f32 copy of adj.
    deg = jnp.sum(adj, axis=1, keepdims=True, dtype=jnp.float32)     # in-degrees
    norm = jax.lax.rsqrt(jnp.maximum(deg, 1.0))                       # clamp(deg,1)**-0.5
    h = feat.astype(jnp.float32) * norm
    weight_f32 = weight.astype(jnp.float32)
    if not project_after:                                             # in_feats > out_feats
        h = jnp.dot(h, weight_f32, preferred_element_type=jnp.float32)

    lin = linear_comb.reshape(n, 1).astype(jnp.float32)
    mask = (deg > 0.0).astype(jnp.float32)                            # zero-mailbox nodes
    cm = (1.0 - lin) * mask * norm                                    # coeff on adj @ h
    hrow = (lin * mask * norm) * h                                    # self term, coeff folded in

    # ---- tile / pad geometry (lane-dense x128 features, bf16-safe sublanes) -
    tm = min(tm, _round_up(n, 16))
    tk = min(tk, _round_up(n, 128))
    # v7x megacore: row axis is the only "parallel" axis -- give both TCs work.
    if n >= 512 and _round_up(n, tm) // tm < 2:
        tm = _round_up((n + 1) // 2, 16)
    np_r = _round_up(n, tm)
    np_c = _round_up(n, tk)

    adj_bf16 = adj.astype(jnp.bfloat16)                               # exact: values 0/1
    if np_r == n and np_c == n:
        adj_p = adj_bf16
    else:
        adj_p = jnp.pad(adj_bf16, ((0, np_r - n), (0, np_c - n)))
    hk_p = jnp.pad(h.astype(jnp.bfloat16),
                   ((0, np_c - n), (0, f_mid_p - f_mid)))             # bf16 stream
    hrow_p = jnp.pad(hrow, ((0, np_r - n), (0, f_mid_p - f_mid)))
    cm_p = jnp.pad(cm, ((0, np_r - n), (0, 0)))
    bias_p = jnp.pad(bias.astype(jnp.float32).reshape(1, f_out),
                     ((0, 0), (0, f_out_p - f_out)))

    grid = (np_r // tm, np_c // tk)
    n_row_tiles = np_r // tm

    in_specs = [
        pl.BlockSpec((tm, tk), lambda i, k: (i, k)),                  # adj tile (bf16)
        pl.BlockSpec((tk, f_mid_p), lambda i, k: (k, 0)),             # h, src side (bf16)
        pl.BlockSpec((tm, f_mid_p), lambda i, k: (i, 0)),             # self term (row tile)
        pl.BlockSpec((tm, 1), lambda i, k: (i, 0)),                   # cm (resident over k)
    ]
    args = [adj_p, hk_p, hrow_p, cm_p]
    scratch = []
    if project_after:
        w_p = jnp.pad(weight_f32, ((0, f_mid_p - f_in), (0, f_out_p - f_out)))
        in_specs.append(pl.BlockSpec((f_mid_p, f_out_p), lambda i, k: (0, 0)))  # resident W
        args.append(w_p)
        kernel = _kernel_project_after
        scratch = [pltpu.VMEM((tm, f_mid_p), jnp.float32)]
    else:
        kernel = _kernel_no_project
    in_specs.append(pl.BlockSpec((1, f_out_p), lambda i, k: (0, 0)))  # resident bias
    args.append(bias_p)

    # ---- advisory cost estimate (includes hk re-stream per row tile) --------
    flops = 2 * np_r * np_c * f_mid_p
    if project_after:
        flops += 2 * np_r * f_mid_p * f_out_p
    bytes_accessed = (np_r * np_c * 2                                  # adj, once
                      + n_row_tiles * np_c * f_mid_p * 2               # hk re-stream
                      + np_r * f_mid_p * 4 + np_r * 4                  # hrow + cm
                      + np_r * f_out_p * 4 + f_out_p * 4               # out + bias
                      + (f_mid_p * f_out_p * 4 if project_after else 0))

    # ---- VMEM budget: double-buffered tiles + resident params/scratch -------
    vmem_est = (2 * tm * tk * 2                  # adj (bf16)
                + 2 * tk * f_mid_p * 2           # hk (bf16)
                + 2 * tm * f_mid_p * 4           # hrow
                + 2 * tm * f_out_p * 4           # out
                + 2 * tm * 4 + 2 * f_out_p * 4   # cm + bias
                + (2 * f_mid_p * f_out_p * 4 if project_after else 0)   # W
                + (tm * f_mid_p * 4 if project_after else 0)            # acc scratch
                + (1 << 16))
    vmem_limit = max(int(2 * vmem_est), 16 << 20)
    vmem_limit = min(vmem_limit, int(0.6 * vmem_cap))
    vmem_limit = max(vmem_limit, int(1.25 * vmem_est))
    vmem_limit = int(min(vmem_limit, int(0.9 * vmem_cap)))

    out_p = pl.pallas_call(
        kernel,
        out_shape=jax.ShapeDtypeStruct((np_r, f_out_p), jnp.float32),
        grid=grid,
        in_specs=in_specs,
        out_specs=pl.BlockSpec((tm, f_out_p), lambda i, k: (i, 0)),
        scratch_shapes=scratch,
        compiler_params=pltpu.CompilerParams(
            dimension_semantics=("parallel", "arbitrary"),
            vmem_limit_bytes=vmem_limit),
        cost_estimate=pl.CostEstimate(
            flops=int(flops), transcendentals=0,
            bytes_accessed=int(bytes_accessed)),
    )(*args)

    return out_p[:n, :f_out]


def reference_gcn(adj, feat, weight, linear_comb, bias):
    """Pure-JAX (f32) reference mirroring the PyTorch/DGL forward."""
    deg = jnp.sum(adj, axis=1, keepdims=True)
    norm = jnp.power(jnp.maximum(deg, 1.0), -0.5)
    h = feat * norm
    f_in, f_out = weight.shape
    if f_in > f_out:
        h = h @ weight
    msg = adj @ h
    lin = linear_comb[:, None]
    out = (1.0 - lin) * msg + lin * h
    out = jnp.where(deg > 0.0, out, 0.0)          # zero-mailbox nodes (DGL UDF reduce)
    if f_in <= f_out:
        out = out @ weight
    return out * norm + bias[None, :]


def xavier_uniform(key, fan_in, fan_out):
    limit = (6.0 / (fan_in + fan_out)) ** 0.5
    return jax.random.uniform(
        key, (fan_in, fan_out), jnp.float32, minval=-limit, maxval=limit)


def _make_graph(key, n_nodes, density=0.4, n_isolated=1):
    adj = (jax.random.uniform(key, (n_nodes, n_nodes)) < density).astype(jnp.float32)
    adj = adj * (1.0 - jnp.eye(n_nodes, dtype=jnp.float32))      # no self loops
    if n_isolated > 0:
        adj = adj.at[:n_isolated, :].set(0.0)                    # zero in-degree nodes
    return adj


if __name__ == "__main__":
    key = jax.random.PRNGKey(0)
    k1, k2, k3, k4, k5, k6, k7 = jax.random.split(key, 7)

    # bf16 h in the hot matmul -> expect ~1e-3 relative error vs. the f32 reference.
    TOL = 2e-2

    # --- case 1: in_feats > out_feats (project-before-aggregate branch) ------
    n1, fi1, fo1 = 8, 32, 16
    adj1 = _make_graph(k1, n1)
    feat1 = jax.random.normal(k2, (n1, fi1), jnp.float32)
    w1 = xavier_uniform(k3, fi1, fo1)
    lin1 = jnp.ones((n1,), jnp.float32) * 0.5
    b1 = jnp.zeros((fo1,), jnp.float32)

    out1 = jax.block_until_ready(our_layer_gcn(adj1, feat1, w1, lin1, b1))
    ref1 = reference_gcn(adj1, feat1, w1, lin1, b1)
    assert out1.shape == (n1, fo1)
    assert jnp.allclose(out1, ref1, atol=TOL, rtol=TOL)

    # --- case 2: in_feats <= out_feats, multi-tile grid (3 row tiles x 2 k) --
    n2, fi2, fo2 = 192, 48, 96
    adj2 = _make_graph(k4, n2, density=0.05, n_isolated=3)
    feat2 = jax.random.normal(k5, (n2, fi2), jnp.float32)
    w2 = xavier_uniform(k6, fi2, fo2)
    lin2 = jax.random.uniform(k7, (n2,), jnp.float32)
    b2 = jnp.full((fo2,), 0.1, jnp.float32)

    out2 = jax.block_until_ready(
        our_layer_gcn(adj2, feat2, w2, lin2, b2, tm=64, tk=128))
    ref2 = reference_gcn(adj2, feat2, w2, lin2, b2)
    assert out2.shape == (n2, fo2)
    assert jnp.allclose(out2, ref2, atol=TOL, rtol=TOL)

    # --- case 3: default (large) tile path, both branches hit the same grid --
    out3 = jax.block_until_ready(our_layer_gcn(adj2, feat2, w2, lin2, b2))
    assert jnp.allclose(out3, ref2, atol=TOL, rtol=TOL)

    print("KERNEL_OK")
</pallas_src>

<mosaic_0001>
module attributes {stable_mosaic.version = 11 : i64} {
  func.func @_kernel_no_project(%arg0: i32, %arg1: i32, %arg2: memref<16x128xbf16, #tpu.memory_space<vmem>>, %arg3: memref<128x128xbf16, #tpu.memory_space<vmem>>, %arg4: memref<16x128xf32, #tpu.memory_space<vmem>>, %arg5: memref<16x1xf32, #tpu.memory_space<vmem>>, %arg6: memref<1x128xf32, #tpu.memory_space<vmem>>, %arg7: memref<16x128xf32, #tpu.memory_space<vmem>>) attributes {dimension_semantics = [#tpu.dimension_semantics<parallel>, #tpu.dimension_semantics<arbitrary>], iteration_bounds = array<i64: 1, 1>, scalar_prefetch = 0 : i64, scratch_operands = 0 : i64, tpu.core_type = #tpu.core_type<tc>, window_params = [{transform_indices = @transform_0, window_bounds = array<i64: 16, 128>}, {transform_indices = @transform_1, window_bounds = array<i64: 128, 128>}, {transform_indices = @transform_2, window_bounds = array<i64: 16, 128>}, {transform_indices = @transform_3, window_bounds = array<i64: 16, 1>}, {pipeline_mode = #tpu.pipeline_mode<synchronous>, transform_indices = @transform_4, window_bounds = array<i64: 1, 128>}, {transform_indices = @transform_5, window_bounds = array<i64: 16, 128>}]} {
    %c0_i32 = arith.constant 0 : i32
    %0 = arith.cmpi eq, %arg1, %c0_i32 : i32
    %1 = arith.extui %0 : i1 to i32
    %c0_i32_0 = arith.constant 0 : i32
    %2 = arith.cmpi ne, %1, %c0_i32_0 : i32
    scf.if %2 {
      %cst_10 = arith.constant 0.000000e+00 : f32
      %12 = vector.broadcast %cst_10 : f32 to vector<16x128xf32>
      %c0_11 = arith.constant 0 : index
      %c0_12 = arith.constant 0 : index
      %13 = vector.load %arg7[%c0_11, %c0_12] : memref<16x128xf32, #tpu.memory_space<vmem>>, vector<16x128xf32>
      tpu.vector_store %arg7[%c0_11, %c0_12], %12 {strides = array<i32>} : memref<16x128xf32, #tpu.memory_space<vmem>>, vector<16x128xf32>,
    } else {
    }
    %c0 = arith.constant 0 : index
    %c0_1 = arith.constant 0 : index
    %3 = vector.load %arg7[%c0, %c0_1] : memref<16x128xf32, #tpu.memory_space<vmem>>, vector<16x128xf32>
    %c0_2 = arith.constant 0 : index
    %c0_3 = arith.constant 0 : index
    %4 = vector.load %arg2[%c0_2, %c0_3] : memref<16x128xbf16, #tpu.memory_space<vmem>>, vector<16x128xbf16>
    %c0_4 = arith.constant 0 : index
    %c0_5 = arith.constant 0 : index
    %5 = vector.load %arg3[%c0_4, %c0_5] : memref<128x128xbf16, #tpu.memory_space<vmem>>, vector<128x128xbf16>
    %cst = arith.constant dense<0.000000e+00> : vector<16x128xf32>
    %6 = tpu.matmul %4, %5, %cst {dimension_numbers = #tpu.dot_dimension_numbers<[1], [0], [0], [1], [0, 0, 1, 1], [], []>} : vector<16x128xbf16>, vector<128x128xbf16>, vector<16x128xf32> -> vector<16x128xf32>
    %7 = arith.addf %3, %6 : vector<16x128xf32>
    %c0_6 = arith.constant 0 : index
    %c0_7 = arith.constant 0 : index
    %8 = vector.load %arg7[%c0_6, %c0_7] : memref<16x128xf32, #tpu.memory_space<vmem>>, vector<16x128xf32>
    tpu.vector_store %arg7[%c0_6, %c0_7], %7 {strides = array<i32>} : memref<16x128xf32, #tpu.memory_space<vmem>>, vector<16x128xf32>,
    %c0_i32_8 = arith.constant 0 : i32
    %9 = arith.cmpi eq, %arg1, %c0_i32_8 : i32
    %10 = arith.extui %9 : i1 to i32
    %c0_i32_9 = arith.constant 0 : i32
    %11 = arith.cmpi ne, %10, %c0_i32_9 : i32
    scf.if %11 {
      %c0_10 = arith.constant 0 : index
      %c0_11 = arith.constant 0 : index
      %12 = vector.load %arg5[%c0_10, %c0_11] : memref<16x1xf32, #tpu.memory_space<vmem>>, vector<16x1xf32>
      %c0_12 = arith.constant 0 : index
      %c0_13 = arith.constant 0 : index
      %13 = vector.load %arg7[%c0_12, %c0_13] : memref<16x128xf32, #tpu.memory_space<vmem>>, vector<16x128xf32>
      %14 = vector.broadcast %12 : vector<16x1xf32> to vector<16x128xf32>
      %15 = arith.mulf %14, %13 : vector<16x128xf32>
      %c0_14 = arith.constant 0 : index
      %c0_15 = arith.constant 0 : index
      %16 = vector.load %arg4[%c0_14, %c0_15] : memref<16x128xf32, #tpu.memory_space<vmem>>, vector<16x128xf32>
      %17 = arith.addf %15, %16 : vector<16x128xf32>
      %c0_16 = arith.constant 0 : index
      %c0_17 = arith.constant 0 : index
      %18 = vector.load %arg6[%c0_16, %c0_17] : memref<1x128xf32, #tpu.memory_space<vmem>>, vector<1x128xf32>
      %19 = vector.broadcast %18 : vector<1x128xf32> to vector<16x128xf32>
      %20 = arith.addf %17, %19 : vector<16x128xf32>
      %c0_18 = arith.constant 0 : index
      %c0_19 = arith.constant 0 : index
      %21 = vector.load %arg7[%c0_18, %c0_19] : memref<16x128xf32, #tpu.memory_space<vmem>>, vector<16x128xf32>
      tpu.vector_store %arg7[%c0_18, %c0_19], %20 {strides = array<i32>} : memref<16x128xf32, #tpu.memory_space<vmem>>, vector<16x128xf32>,
    } else {
    }
    return
  }
  func.func @transform_0(%arg0: i32, %arg1: i32) -> (i32, i32) {
    %c0_i32 = arith.constant 0 : i32
    return %arg0, %arg1 : i32, i32
  }
  func.func @transform_1(%arg0: i32, %arg1: i32) -> (i32, i32) {
    %c0_i32 = arith.constant 0 : i32
    %c0_i32_0 = arith.constant 0 : i32
    return %arg1, %c0_i32 : i32, i32
  }
  func.func @transform_2(%arg0: i32, %arg1: i32) -> (i32, i32) {
    %c0_i32 = arith.constant 0 : i32
    %c0_i32_0 = arith.constant 0 : i32
    return %arg0, %c0_i32 : i32, i32
  }
  func.func @transform_3(%arg0: i32, %arg1: i32) -> (i32, i32) {
    %c0_i32 = arith.constant 0 : i32
    %c0_i32_0 = arith.constant 0 : i32
    return %arg0, %c0_i32 : i32, i32
  }
  func.func @transform_4(%arg0: i32, %arg1: i32) -> (i32, i32) {
    %c0_i32 = arith.constant 0 : i32
    %c0_i32_0 = arith.constant 0 : i32
    %c0_i32_1 = arith.constant 0 : i32
    return %c0_i32, %c0_i32_0 : i32, i32
  }
  func.func @transform_5(%arg0: i32, %arg1: i32) -> (i32, i32) {
    %c0_i32 = arith.constant 0 : i32
    %c0_i32_0 = arith.constant 0 : i32
    return %arg0, %c0_i32 : i32, i32
  }
}

</mosaic_0001>

<llo_original>
// kernel: our_layer_gcn.1
$region0: #{our_layer_gcn.1}
  #allocation0 [shape = 'u32[]', space=smem, size = 0x4, offset = 0x4, fixed_abs, tag = 'smem constant byte address 0x4 - core index']
  #allocation1 [shape = 'u32[144,128]{1,0:T(1,128)}', space=vmem, size = 0x12000, scoped, tag = 'internal scratch']
  %s0 = inlined_call_operand.vmem [shape: bf16[16,128], index: 0, kind: input, shape index: {}]
  %s1 = inlined_call_operand.vmem [shape: bf16[128,128], index: 1, kind: input, shape index: {}]
  %s2 = inlined_call_operand.vmem [shape: f32[16,128], index: 2, kind: input, shape index: {}]
  %s3 = inlined_call_operand.vmem [shape: f32[16,1], index: 3, kind: input, shape index: {}]
  %s4 = inlined_call_operand.vmem [shape: f32[1,128], index: 4, kind: input, shape index: {}]
  %s5 = inlined_call_operand.vmem [shape: f32[16,128], index: 5, kind: output, shape index: {}]
  %s6 = sld [smem:[#allocation0]]
  $region38: #{our_layer_gcn.1} parent=0
    _
  %s8 = ssub.s32 1, %s6
  %s9 = scalar_select 0, %s8, %s6
  // Predicated region
  $region2: #{our_layer_gcn.1} parent=0 // pred_check
    _
  $region3: #{our_layer_gcn.1} parent=0 // pred_check_branch
    %11 = sbr.rel (0) target = $region5
  $region4: #{our_layer_gcn.1} parent=0 // pred_region
    _
  $region5: #{our_layer_gcn.1} parent=0 // pred_fallthru
    _
  // Predicated region
  $region6: #{our_layer_gcn.1} parent=0 // pred_check
    _
  $region7: #{our_layer_gcn.1} parent=0 // pred_check_branch
    %13 = sbr.rel (0) target = $region9
  $region8: #{our_layer_gcn.1} parent=0 // pred_region
    _
  $region9: #{our_layer_gcn.1} parent=0 // pred_fallthru
    _
  // Predicated region
  $region10: #{our_layer_gcn.1} parent=0 // pred_check
    _
  $region11: #{our_layer_gcn.1} parent=0 // pred_check_branch
    %15 = sbr.rel (0) target = $region13
  $region12: #{our_layer_gcn.1} parent=0 // pred_region
    _
  $region13: #{our_layer_gcn.1} parent=0 // pred_fallthru
    _
  // Predicated region
  $region14: #{our_layer_gcn.1} parent=0 // pred_check
    _
  $region15: #{our_layer_gcn.1} parent=0 // pred_check_branch
    %17 = sbr.rel (0) target = $region17
  $region16: #{our_layer_gcn.1} parent=0 // pred_region
    _
  $region17: #{our_layer_gcn.1} parent=0 // pred_fallthru
    _
  // Predicated region
  $region18: #{our_layer_gcn.1} parent=0 // pred_check
    _
  $region19: #{our_layer_gcn.1} parent=0 // pred_check_branch
    %19 = sbr.rel (0) target = $region21
  $region20: #{our_layer_gcn.1} parent=0 // pred_region
    _
  $region21: #{our_layer_gcn.1} parent=0 // pred_fallthru
    _
  %p21 = scmp.eq.s32.totalorder 0, 0
  // Predicated region
  $region22: #{our_layer_gcn.1} parent=0 // pred_check
    %p22 = pneg %p21
  $region23: #{our_layer_gcn.1} parent=0 // pred_check_branch
    %24 = sbr.rel (%p22) target = $region25
  $region24: #{our_layer_gcn.1} parent=0 // pred_region
    %25 = vst [vmem:[%s5] sm:$0xff] 0.0
    %26 = vst [vmem:[%s5 + $0x8] sm:$0xff] 0.0
  $region25: #{our_layer_gcn.1} parent=0 // pred_fallthru
    _
  %v27 = vld [vmem:[%s5] sm:$0xff]
  %v28 = vld [vmem:[%s5 + $0x8] sm:$0xff]
  %v29 = vld [vmem:[%s0] sm:$0xf]
  %v30 = vld [vmem:[%s0 + $0x4] sm:$0xf]
  %v31 = vld [vmem:[%s1] sm:$0xf]
  %v32 = vld [vmem:[%s1 + $0x4] sm:$0xf]
  %v33 = vld [vmem:[%s1 + $0x8] sm:$0xf]
  %v34 = vld [vmem:[%s1 + $0xc] sm:$0xf]
  %v35 = vld [vmem:[%s1 + $0x10] sm:$0xf]
  %v36 = vld [vmem:[%s1 + $0x14] sm:$0xf]
  %v37 = vld [vmem:[%s1 + $0x18] sm:$0xf]
  %v38 = vld [vmem:[%s1 + $0x1c] sm:$0xf]
  %v39 = vld [vmem:[%s1 + $0x20] sm:$0xf]
  %v40 = vld [vmem:[%s1 + $0x24] sm:$0xf]
  %v41 = vld [vmem:[%s1 + $0x28] sm:$0xf]
  %v42 = vld [vmem:[%s1 + $0x2c] sm:$0xf]
  %v43 = vld [vmem:[%s1 + $0x30] sm:$0xf]
  %v44 = vld [vmem:[%s1 + $0x34] sm:$0xf]
  %v45 = vld [vmem:[%s1 + $0x38] sm:$0xf]
  %v46 = vld [vmem:[%s1 + $0x3c] sm:$0xf]
  %v49 = vunpack.c.l.b16 %v29
  %v50 = vunpack.c.l.b16 %v30
  %v51 = vpack.c.b16 %v50, %v49
  %v69 = vunpack.c.l.b16 %v31
  %v70 = vunpack.c.l.b16 %v32
  %v71 = vunpack.c.l.b16 %v33
  %v72 = vunpack.c.l.b16 %v34
  %v73 = vunpack.c.l.b16 %v35
  %v74 = vunpack.c.l.b16 %v36
  %v75 = vunpack.c.l.b16 %v37
  %v76 = vunpack.c.l.b16 %v38
  %v77 = vunpack.c.l.b16 %v39
  %v78 = vunpack.c.l.b16 %v40
  %v79 = vunpack.c.l.b16 %v41
  %v80 = vunpack.c.l.b16 %v42
  %v81 = vunpack.c.l.b16 %v43
  %v82 = vunpack.c.l.b16 %v44
  %v83 = vunpack.c.l.b16 %v45
  %v84 = vunpack.c.l.b16 %v46
  %v85 = vpack.c.b16 %v70, %v69
  %v86 = vpack.c.b16 %v72, %v71
  %v87 = vpack.c.b16 %v74, %v73
  %v88 = vpack.c.b16 %v76, %v75
  %v89 = vpack.c.b16 %v78, %v77
  %v90 = vpack.c.b16 %v80, %v79
  %v91 = vpack.c.b16 %v82, %v81
  %v92 = vpack.c.b16 %v84, %v83
  %101 = vmatprep.subr.bf16.mxu0 0
  %102 = vmatpush1.bf16.msra.mxu0 %v85
  %103 = vmatprep.subr.bf16.mxu0 0
  %104 = vmatpush1.bf16.msra.mxu0 %v86
  %105 = vmatprep.subr.bf16.mxu0 0
  %106 = vmatpush1.bf16.msra.mxu0 %v87
  %107 = vmatprep.subr.bf16.mxu0 0
  %108 = vmatpush1.bf16.msra.mxu0 %v88
  %109 = vmatprep.subr.bf16.mxu0 0
  %110 = vmatpush1.bf16.msra.mxu0 %v89
  %111 = vmatprep.subr.bf16.mxu0 0
  %112 = vmatpush1.bf16.msra.mxu0 %v90
  %113 = vmatprep.subr.bf16.mxu0 0
  %114 = vmatpush1.bf16.msra.mxu0 %v91
  %115 = vmatprep.subr.bf16.mxu0 0
  %116 = vmatpush1.bf16.msra.mxu0 %v92
  %117 = vmatprep.subr.bf16.mxu0 0
  %118 = vmatpush1.bf16.msra.mxu0 0
  %119 = vmatprep.subr.bf16.mxu0 0
  %120 = vmatpush1.bf16.msra.mxu0 0
  %121 = vmatprep.subr.bf16.mxu0 0
  %122 = vmatpush1.bf16.msra.mxu0 0
  %123 = vmatprep.subr.bf16.mxu0 0
  %124 = vmatpush1.bf16.msra.mxu0 0
  %125 = vmatprep.subr.bf16.mxu0 0
  %126 = vmatpush1.bf16.msra.mxu0 0
  %127 = vmatprep.subr.bf16.mxu0 0
  %128 = vmatpush1.bf16.msra.mxu0 0
  %129 = vmatprep.subr.bf16.mxu0 0
  %130 = vmatpush1.bf16.msra.mxu0 0
  %131 = vmatprep.subr.bf16.mxu0 0
  %132 = vmatpush1.bf16.msra.mxu0 0
  %133 = vmatprep.mubr.bf16.mxu0 0
  %134 = vmatmul.mubr.bf16.gmra.mrb[0].mxu0 %v51
  %v135 = vpop.f32.mrb[0].mxu0
  %v136 = vadd.f32 0.0, %v135
  %v137 = vpop.f32.mrb[0].mxu0
  %v138 = vpop.f32.mrb[0].mxu0
  %v139 = vadd.f32 0.0, %v138
  %v140 = vpop.f32.mrb[0].mxu0
  %141 = vdwg.mxu0
  %v142 = vadd.f32 %v27, %v136
  %v143 = vadd.f32 %v28, %v139
  %144 = vst [vmem:[%s5] sm:$0xff] %v142
  %145 = vst [vmem:[%s5 + $0x8] sm:$0xff] %v143
  // Predicated region
  $region26: #{our_layer_gcn.1} parent=0 // pred_check
    %p146 = pneg %p21
  $region27: #{our_layer_gcn.1} parent=0 // pred_check_branch
    %148 = sbr.rel (%p146) target = $region29
  $region28: #{our_layer_gcn.1} parent=0 // pred_region
    %v149 = vld [vmem:[%s3] sm:$0xff]
    %v150 = vld [vmem:[%s3 + $0x8] sm:$0xff]
    %v151 = vld [vmem:[%s5] sm:$0xff]
    %v152 = vld [vmem:[%s5 + $0x8] sm:$0xff]
    %154 = vset.pattern.permute.xlu0 0
    %155 = vperm.xlu0 %154, %v149
    %v156 = vpop.permute.xlu0 %155
    %159 = vset.pattern.permute.xlu0 0
    %160 = vperm.xlu0 %159, %v150
    %v161 = vpop.permute.xlu0 %160
    %v163 = vmul.f32 %v156, %v151
    %v164 = vmul.f32 %v161, %v152
    %v165 = vld [vmem:[%s2] sm:$0xff]
    %v166 = vld [vmem:[%s2 + $0x8] sm:$0xff]
    %v167 = vadd.f32 %v163, %v165
    %v168 = vadd.f32 %v164, %v166
    %v169 = vld [vmem:[%s4] sm:$0x1]
    %v171 = vlaneseq
    %v172 = vshrl.u32 %v171, 7
    %v173 = vsub.s32 0, %v172
    %v174 = vrot.slane %v169, %v173
    %v176 = vadd.f32 %v167, %v174
    %v177 = vadd.f32 %v168, %v174
    %178 = vst [vmem:[%s5] sm:$0xff] %v176
    %179 = vst [vmem:[%s5 + $0x8] sm:$0xff] %v177
  $region29: #{our_layer_gcn.1} parent=0 // pred_fallthru
    _
  // Predicated region
  $region30: #{our_layer_gcn.1} parent=0 // pred_check
    _
  $region31: #{our_layer_gcn.1} parent=0 // pred_check_branch
    %181 = sbr.rel (0) target = $region33
  $region32: #{our_layer_gcn.1} parent=0 // pred_region
    _
  $region33: #{our_layer_gcn.1} parent=0 // pred_fallthru
    _
  // Predicated region
  $region34: #{our_layer_gcn.1} parent=0 // pred_check
    _
  $region35: #{our_layer_gcn.1} parent=0 // pred_check_branch
    %183 = sbr.rel (0) target = $region37
  $region36: #{our_layer_gcn.1} parent=0 // pred_region
    _
  $region37: #{our_layer_gcn.1} parent=0 // pred_fallthru
    _

</llo_original>
